<compile_context>
chip_gen: v7x
topology: tpu7x:2x2x1
jax: 0.10.0
libtpu: 0.0.40
codegen_flags: <defaults>
</compile_context>

<pallas_src>
import jax
import jax.numpy as jnp
from jax.experimental import pallas as pl
from jax.experimental.pallas import tpu as pltpu

TEXT_DIM = 768            # BERT pooled-output width
IMG_DIM = 1000            # ResNet-34 logit width
IMG_PAD = 1024            # lane-aligned image-feature width
COMBINED_DIM = TEXT_DIM + IMG_DIM   # 1768
HIDDEN = 512              # fc_early out
OUT_DIM = 2               # fc_final out
OUT_PAD = 128             # lane-dense output slab; sliced to 2 outside


# ---------------------------------------------------------------------------
# Pallas kernel: folded fc_early + fc_final head (single affine map)
# ---------------------------------------------------------------------------
def _fused_head_kernel(t_ref, i_ref, wt_ref, wi_ref, b_ref, o_ref):
    # y = text @ W_eff_text + img @ W_eff_img + b_eff   (bf16 in, f32 accumulate)
    y = jnp.dot(t_ref[...], wt_ref[...], preferred_element_type=jnp.float32)
    y = y + jnp.dot(i_ref[...], wi_ref[...], preferred_element_type=jnp.float32)
    o_ref[...] = (y + b_ref[...]).astype(o_ref.dtype)   # bf16 store (f32 accum)


# ---------------------------------------------------------------------------
# One-time parameter preparation (hoisted out of the forward path)
# ---------------------------------------------------------------------------
def prepare_fused_params(params):
    """Fold fc_early/fc_final (exact: no activation between them), split the
    folded weight at the concat boundary, zero-pad to lane-aligned widths
    (padded rows/cols are zero -> results are exact), cast weights to bf16.
    Also pre-pad the stand-in image projection to IMG_PAD output columns so
    the backbone emits lane-aligned bf16 features directly (no wrapper pad)."""
    w1, b1 = params["fc_early_w"], params["fc_early_b"]   # [1768,512], [512]
    w2, b2 = params["fc_final_w"], params["fc_final_b"]   # [512,2],    [2]
    w_eff = w1 @ w2                                        # [1768, 2]  f32 fold
    b_eff = b1 @ w2 + b2                                   # [2]
    w_text = jnp.zeros((TEXT_DIM, OUT_PAD), jnp.float32).at[:, :OUT_DIM].set(
        w_eff[:TEXT_DIM])
    w_img = jnp.zeros((IMG_PAD, OUT_PAD), jnp.float32).at[:IMG_DIM, :OUT_DIM].set(
        w_eff[TEXT_DIM:])
    b_pad = jnp.zeros((1, OUT_PAD), jnp.float32).at[0, :OUT_DIM].set(b_eff)

    # Pre-padded image projection (stand-in for ResNet's final fc): columns
    # 1000..1023 are zero, so they meet zero rows of w_img -> exact.
    c = params["img_proj_w"].shape[0]
    img_w_pad = jnp.zeros((c, IMG_PAD), jnp.float32).at[:, :IMG_DIM].set(
        params["img_proj_w"])
    img_b_pad = jnp.zeros((IMG_PAD,), jnp.float32).at[:IMG_DIM].set(
        params["img_proj_b"])

    return {
        "w_text": w_text.astype(jnp.bfloat16),     # [768, 128]  bf16, VMEM-resident
        "w_img": w_img.astype(jnp.bfloat16),       # [1024,128]  bf16, VMEM-resident
        "b_eff": b_pad,                            # [1, 128]    f32 (post-accum add)
        "img_proj_w_pad": img_w_pad,               # [C, 1024]   producer-side pad
        "img_proj_b_pad": img_b_pad,               # [1024]
    }


# ---------------------------------------------------------------------------
# Fused head wrapper
# ---------------------------------------------------------------------------
def fusion_head(text_features, image_features, fused, *, block_b=1024):
    """text_features [B,768], image_features [B,1000|1024] -> logits [B,2] f32.

    Producers are expected to emit bf16, lane-padded features; the cast / pad
    below is only a fallback so foreign (f32, 1000-wide) callers stay correct.
    """
    B = text_features.shape[0]

    if image_features.shape[1] != IMG_PAD:   # fallback only
        image_features = jnp.pad(
            image_features, ((0, 0), (0, IMG_PAD - image_features.shape[1])))

    t = text_features
    if t.dtype != jnp.bfloat16:              # fallback only
        t = t.astype(jnp.bfloat16)
    im = image_features
    if im.dtype != jnp.bfloat16:             # fallback only
        im = im.astype(jnp.bfloat16)

    # Batch tiling.  Large tiles amortize the ~0.35 us per-grid-step pipeline
    # overhead of this activation-DMA-bound head.  Tiny batches get a single
    # tile rounded up to a multiple of 16 (bf16 sublane pack) instead of a
    # ragged bm=B tile.
    if B <= block_b:
        bm = max(16, -(-B // 16) * 16)
        n_blk = 1
    else:
        bm = block_b
        n_blk = -(-B // bm)
    b_tot = bm * n_blk
    if b_tot != B:
        t = jnp.pad(t, ((0, b_tot - B), (0, 0)))
        im = jnp.pad(im, ((0, b_tot - B), (0, 0)))

    wt, wi, be = fused["w_text"], fused["w_img"], fused["b_eff"]

    cost = pl.CostEstimate(
        flops=2 * b_tot * (TEXT_DIM + IMG_PAD) * OUT_PAD,
        transcendentals=0,
        bytes_accessed=(t.size + im.size + wt.size + wi.size) * 2   # bf16 in
                       + be.size * 4                                 # f32 bias
                       + b_tot * OUT_PAD * 2,                        # bf16 out
    )

    out_pad = pl.pallas_call(
        _fused_head_kernel,
        out_shape=jax.ShapeDtypeStruct((b_tot, OUT_PAD), jnp.bfloat16),
        grid_spec=pltpu.PrefetchScalarGridSpec(
            num_scalar_prefetch=0,
            grid=(n_blk,),
            in_specs=[
                pl.BlockSpec((bm, TEXT_DIM), lambda i: (i, 0)),
                pl.BlockSpec((bm, IMG_PAD), lambda i: (i, 0)),
                pl.BlockSpec((TEXT_DIM, OUT_PAD), lambda i: (0, 0)),  # VMEM-resident
                pl.BlockSpec((IMG_PAD, OUT_PAD), lambda i: (0, 0)),   # VMEM-resident
                pl.BlockSpec((1, OUT_PAD), lambda i: (0, 0)),
            ],
            out_specs=pl.BlockSpec((bm, OUT_PAD), lambda i: (i, 0)),
        ),
        compiler_params=pltpu.CompilerParams(
            # batch tiles are independent -> pipelined, and shardable across
            # v7x's 2 TensorCores (harmless on v5e/v6e).
            dimension_semantics=("parallel",),
            # 32 MiB keeps block_b up to ~2048 legal on v5e's 16 MiB scoped
            # default; matches the v6e/v7x defaults (no-op there).
            vmem_limit_bytes=32 * 1024 * 1024,
        ),
        cost_estimate=cost,
    )(t, im, wt, wi, be)

    return out_pad[:B, :OUT_DIM].astype(jnp.float32)


# ---------------------------------------------------------------------------
# Deterministic parameter init (PyTorch-Linear-style uniform)
# ---------------------------------------------------------------------------
def _linear_init(key, fan_in, fan_out):
    kw, kb = jax.random.split(key)
    bound = 1.0 / jnp.sqrt(float(fan_in))
    w = jax.random.uniform(kw, (fan_in, fan_out), jnp.float32, -bound, bound)
    b = jax.random.uniform(kb, (fan_out,), jnp.float32, -bound, bound)
    return w, b


def init_params(key, vocab_size=100, img_channels=3):
    k0, k1, k2, k3 = jax.random.split(key, 4)
    params = {}
    # module's own layers
    params["fc_early_w"], params["fc_early_b"] = _linear_init(k0, COMBINED_DIM, HIDDEN)
    params["fc_final_w"], params["fc_final_b"] = _linear_init(k1, HIDDEN, OUT_DIM)
    # stand-in backbone params
    params["embed_table"] = 0.02 * jax.random.normal(k2, (vocab_size, TEXT_DIM), jnp.float32)
    params["img_proj_w"], params["img_proj_b"] = _linear_init(k3, img_channels, IMG_DIM)
    return params


# ---------------------------------------------------------------------------
# Stand-in feature extractors (plain-JAX glue).  Both emit bf16, lane-aligned
# features so the fused head ingests them with no extra HBM round trip.
# ---------------------------------------------------------------------------
def _standin_text_backbone(input_ids, attention_mask, embed_table):
    # TODO(synk): real module uses pretrained DistilBERT pooled output; stand-in
    # is embedding lookup + attention-masked mean pool + tanh -> [B, 768] bf16.
    emb = embed_table[input_ids]                              # [B, S, 768]
    mask = attention_mask[..., None].astype(jnp.float32)      # [B, S, 1]
    pooled = (emb * mask).sum(axis=1) / jnp.maximum(mask.sum(axis=1), 1.0)
    return jnp.tanh(pooled).astype(jnp.bfloat16)              # [B, 768] bf16


def _standin_image_backbone(images_nchw, proj_w_pad, proj_b_pad):
    # TODO(synk): real module uses pretrained ResNet-34 logits; stand-in is
    # global average pool over H,W (NCHW) + pre-padded linear projection
    # -> [B, 1024] bf16 (cols 1000..1023 are exactly zero).
    gap = images_nchw.mean(axis=(2, 3))                       # [B, C]
    return (gap @ proj_w_pad + proj_b_pad).astype(jnp.bfloat16)   # [B, 1024] bf16


# ---------------------------------------------------------------------------
# Forward pass matching EarlyFusionModel.forward
# ---------------------------------------------------------------------------
def early_fusion_forward(params, fused_params, input_ids, attention_mask, images):
    text_features = _standin_text_backbone(input_ids, attention_mask,
                                           params["embed_table"])        # [B,768] bf16
    image_features = _standin_image_backbone(images,
                                             fused_params["img_proj_w_pad"],
                                             fused_params["img_proj_b_pad"])  # [B,1024] bf16
    # concat is folded away: the head consumes the two feature blocks directly.
    return fusion_head(text_features, image_features, fused_params)      # [B, 2] f32


if __name__ == "__main__":
    key = jax.random.PRNGKey(0)
    kp, kid, kmask, kimg = jax.random.split(key, 4)

    B, S, C, H, W = 2, 8, 3, 16, 16
    vocab = 100

    params = init_params(kp, vocab_size=vocab, img_channels=C)
    fused_params = prepare_fused_params(params)   # one-time prep (hoisted)

    input_ids = jax.random.randint(kid, (B, S), 0, vocab, dtype=jnp.int32)
    attention_mask = (jax.random.uniform(kmask, (B, S)) > 0.2).astype(jnp.int32)
    images = jax.random.normal(kimg, (B, C, H, W), jnp.float32)   # NCHW, like PyTorch

    out = early_fusion_forward(params, fused_params, input_ids, attention_mask, images)
    out = jax.block_until_ready(out)
    assert out.shape == (B, 2), out.shape

    # Reference check of the Pallas head against the plain-JAX f32 two-layer path.
    emb = params["embed_table"][input_ids]
    msk = attention_mask[..., None].astype(jnp.float32)
    text_f = jnp.tanh((emb * msk).sum(axis=1) / jnp.maximum(msk.sum(axis=1), 1.0))
    img_f = images.mean(axis=(2, 3)) @ params["img_proj_w"] + params["img_proj_b"]
    comb = jnp.concatenate([text_f, img_f], axis=1)
    ref = (comb @ params["fc_early_w"] + params["fc_early_b"]) \
        @ params["fc_final_w"] + params["fc_final_b"]
    assert jnp.allclose(out, ref, atol=1e-2, rtol=5e-2), (out, ref)

    print("KERNEL_OK")
</pallas_src>

<mosaic_0001>
module attributes {stable_mosaic.version = 11 : i64} {
  func.func @_fused_head_kernel(%arg0: i32, %arg1: memref<16x768xbf16, #tpu.memory_space<vmem>>, %arg2: memref<16x1024xbf16, #tpu.memory_space<vmem>>, %arg3: memref<768x128xbf16, #tpu.memory_space<vmem>>, %arg4: memref<1024x128xbf16, #tpu.memory_space<vmem>>, %arg5: memref<1x128xf32, #tpu.memory_space<vmem>>, %arg6: memref<16x128xbf16, #tpu.memory_space<vmem>>) attributes {dimension_semantics = [#tpu.dimension_semantics<parallel>], iteration_bounds = array<i64: 1>, scalar_prefetch = 0 : i64, scratch_operands = 0 : i64, tpu.core_type = #tpu.core_type<tc>, window_params = [{transform_indices = @transform_0, window_bounds = array<i64: 16, 768>}, {transform_indices = @transform_1, window_bounds = array<i64: 16, 1024>}, {pipeline_mode = #tpu.pipeline_mode<synchronous>, transform_indices = @transform_2, window_bounds = array<i64: 768, 128>}, {pipeline_mode = #tpu.pipeline_mode<synchronous>, transform_indices = @transform_3, window_bounds = array<i64: 1024, 128>}, {pipeline_mode = #tpu.pipeline_mode<synchronous>, transform_indices = @transform_4, window_bounds = array<i64: 1, 128>}, {transform_indices = @transform_5, window_bounds = array<i64: 16, 128>}]} {
    %c0 = arith.constant 0 : index
    %c0_0 = arith.constant 0 : index
    %0 = vector.load %arg1[%c0, %c0_0] : memref<16x768xbf16, #tpu.memory_space<vmem>>, vector<16x768xbf16>
    %c0_1 = arith.constant 0 : index
    %c0_2 = arith.constant 0 : index
    %1 = vector.load %arg3[%c0_1, %c0_2] : memref<768x128xbf16, #tpu.memory_space<vmem>>, vector<768x128xbf16>
    %cst = arith.constant dense<0.000000e+00> : vector<16x128xf32>
    %2 = tpu.matmul %0, %1, %cst {dimension_numbers = #tpu.dot_dimension_numbers<[1], [0], [0], [1], [0, 0, 1, 1], [], []>} : vector<16x768xbf16>, vector<768x128xbf16>, vector<16x128xf32> -> vector<16x128xf32>
    %c0_3 = arith.constant 0 : index
    %c0_4 = arith.constant 0 : index
    %3 = vector.load %arg2[%c0_3, %c0_4] : memref<16x1024xbf16, #tpu.memory_space<vmem>>, vector<16x1024xbf16>
    %c0_5 = arith.constant 0 : index
    %c0_6 = arith.constant 0 : index
    %4 = vector.load %arg4[%c0_5, %c0_6] : memref<1024x128xbf16, #tpu.memory_space<vmem>>, vector<1024x128xbf16>
    %cst_7 = arith.constant dense<0.000000e+00> : vector<16x128xf32>
    %5 = tpu.matmul %3, %4, %cst_7 {dimension_numbers = #tpu.dot_dimension_numbers<[1], [0], [0], [1], [0, 0, 1, 1], [], []>} : vector<16x1024xbf16>, vector<1024x128xbf16>, vector<16x128xf32> -> vector<16x128xf32>
    %6 = arith.addf %2, %5 : vector<16x128xf32>
    %c0_8 = arith.constant 0 : index
    %c0_9 = arith.constant 0 : index
    %7 = vector.load %arg5[%c0_8, %c0_9] : memref<1x128xf32, #tpu.memory_space<vmem>>, vector<1x128xf32>
    %8 = vector.broadcast %7 : vector<1x128xf32> to vector<16x128xf32>
    %9 = arith.addf %6, %8 : vector<16x128xf32>
    %10 = arith.truncf %9 : vector<16x128xf32> to vector<16x128xbf16>
    %c0_10 = arith.constant 0 : index
    %c0_11 = arith.constant 0 : index
    %11 = vector.load %arg6[%c0_10, %c0_11] : memref<16x128xbf16, #tpu.memory_space<vmem>>, vector<16x128xbf16>
    tpu.vector_store %arg6[%c0_10, %c0_11], %10 {strides = array<i32>} : memref<16x128xbf16, #tpu.memory_space<vmem>>, vector<16x128xbf16>,
    return
  }
  func.func @transform_0(%arg0: i32) -> (i32, i32) {
    %c0_i32 = arith.constant 0 : i32
    %c0_i32_0 = arith.constant 0 : i32
    return %arg0, %c0_i32 : i32, i32
  }
  func.func @transform_1(%arg0: i32) -> (i32, i32) {
    %c0_i32 = arith.constant 0 : i32
    %c0_i32_0 = arith.constant 0 : i32
    return %arg0, %c0_i32 : i32, i32
  }
  func.func @transform_2(%arg0: i32) -> (i32, i32) {
    %c0_i32 = arith.constant 0 : i32
    %c0_i32_0 = arith.constant 0 : i32
    %c0_i32_1 = arith.constant 0 : i32
    return %c0_i32, %c0_i32_0 : i32, i32
  }
  func.func @transform_3(%arg0: i32) -> (i32, i32) {
    %c0_i32 = arith.constant 0 : i32
    %c0_i32_0 = arith.constant 0 : i32
    %c0_i32_1 = arith.constant 0 : i32
    return %c0_i32, %c0_i32_0 : i32, i32
  }
  func.func @transform_4(%arg0: i32) -> (i32, i32) {
    %c0_i32 = arith.constant 0 : i32
    %c0_i32_0 = arith.constant 0 : i32
    %c0_i32_1 = arith.constant 0 : i32
    return %c0_i32, %c0_i32_0 : i32, i32
  }
  func.func @transform_5(%arg0: i32) -> (i32, i32) {
    %c0_i32 = arith.constant 0 : i32
    %c0_i32_0 = arith.constant 0 : i32
    return %arg0, %c0_i32 : i32, i32
  }
}

</mosaic_0001>

<llo_original>
// kernel: tpu_custom_call.1
$region0: #{tpu_custom_call.1}
  #allocation0 [shape = 'u32[]', space=smem, size = 0x4, offset = 0x4, fixed_abs, tag = 'smem constant byte address 0x4 - core index']
  #allocation1 [shape = 'u32[144,128]{1,0:T(1,128)}', space=vmem, size = 0x12000, scoped, tag = 'internal scratch']
  %s0 = inlined_call_operand.hbm [shape: bf16[16,768], index: 0, kind: input, shape index: {}]
  %s1 = inlined_call_operand.hbm [shape: bf16[16,1024], index: 1, kind: input, shape index: {}]
  %s2 = inlined_call_operand.hbm [shape: bf16[768,128], index: 2, kind: input, shape index: {}]
  %s3 = inlined_call_operand.hbm [shape: bf16[1024,128], index: 3, kind: input, shape index: {}]
  %s4 = inlined_call_operand.vmem [shape: f32[1,128], index: 4, kind: input, shape index: {}]
  %s5 = inlined_call_operand.hbm [shape: bf16[16,128], index: 5, kind: output, shape index: {}]
  %s6 = sld [smem:[#allocation0]]
  $region46: #{tpu_custom_call.1} parent=0
    _
  %s8 = ssub.s32 1, %s6
  %s9 = scalar_select 0, %s8, %s6
  $region1: #{tpu_custom_call.1} parent=0
    #allocation2 [shape = 'u8[24576]{0}', space=vmem, size = 0x6000, scoped, tag = 'input window, operand 0, single buffered']
    #allocation3 [shape = 's32[1]{0}', space=sflag, size = 0x4, scoped, tag = 'scoped memory for tpu_custom_call.1']
    #allocation4 [shape = 's32[1]{0}', space=sflag, size = 0x4, scoped, tag = 'scoped memory for tpu_custom_call.1']
    #allocation5 [shape = 'u8[32768]{0}', space=vmem, size = 0x8000, scoped, tag = 'input window, operand 1, single buffered']
    #allocation6 [shape = 's32[1]{0}', space=sflag, size = 0x4, scoped, tag = 'scoped memory for tpu_custom_call.1']
    #allocation7 [shape = 'u8[196608]{0}', space=vmem, size = 0x30000, scoped, tag = 'input window, operand 2, single buffered']
    #allocation8 [shape = 'u8[262144]{0}', space=vmem, size = 0x40000, scoped, tag = 'input window, operand 3, single buffered']
    #allocation9 [shape = 's32[1]{0}', space=sflag, size = 0x4, scoped, tag = 'scoped memory for tpu_custom_call.1']
    #allocation10 [shape = 'u8[4096]{0}', space=vmem, size = 0x1000, scoped, tag = 'output window, operand 0, single buffered']
    %10 = vsyncpa [#allocation3], 0
    %11 = vsyncpa [#allocation6], 0
    %12 = vsyncpa [#allocation9], 0
    %13 = vsyncpa [#allocation4], 0
    // Predicated region
    $region2: #{tpu_custom_call.1} parent=1 // pred_check
      _
    $region3: #{tpu_custom_call.1} parent=1 // pred_check_branch
      %15 = sbr.rel (0) target = $region5
    $region4: #{tpu_custom_call.1} parent=1 // pred_region
      %s17 = ssub.s32 768, 768
      %18 = vsyncadd [#allocation3], %s17
      %s19 = sshll.u32 [#allocation2], 4
      %s20 = int_to_ptr.vmem [resolvable:$true] %s19
      %25 = dma.hbm_to_vmem [thread:$0]  %s0, 768, %s20, [#allocation3], 384, 384, 24
    $region5: #{tpu_custom_call.1} parent=1 // pred_fallthru
      _
    // Predicated region
    $region6: #{tpu_custom_call.1} parent=1 // pred_check
      _
    $region7: #{tpu_custom_call.1} parent=1 // pred_check_branch
      %27 = sbr.rel (0) target = $region9
    $region8: #{tpu_custom_call.1} parent=1 // pred_region
      %s29 = ssub.s32 1024, 1024
      %30 = vsyncadd [#allocation6], %s29
      %s31 = sshll.u32 [#allocation5], 4
      %s32 = int_to_ptr.vmem [resolvable:$true] %s31
      %37 = dma.hbm_to_vmem [thread:$0]  %s1, 1024, %s32, [#allocation6], 512, 512, 32
    $region9: #{tpu_custom_call.1} parent=1 // pred_fallthru
      _
    // Predicated region
    $region10: #{tpu_custom_call.1} parent=1 // pred_check
      _
    $region11: #{tpu_custom_call.1} parent=1 // pred_check_branch
      %39 = sbr.rel (0) target = $region13
    $region12: #{tpu_custom_call.1} parent=1 // pred_region
      %s41 = ssub.s32 6144, 6144
      %42 = vsyncadd [#allocation6], %s41
      %s43 = sshll.u32 [#allocation7], 4
      %s44 = int_to_ptr.vmem [resolvable:$true] %s43
      %49 = dma.hbm_to_vmem [thread:$0]  %s2, 6144, %s44, [#allocation6], 64, 64, 4
    $region13: #{tpu_custom_call.1} parent=1 // pred_fallthru
      _
    // Predicated region
    $region14: #{tpu_custom_call.1} parent=1 // pred_check
      _
    $region15: #{tpu_custom_call.1} parent=1 // pred_check_branch
      %51 = sbr.rel (0) target = $region17
    $region16: #{tpu_custom_call.1} parent=1 // pred_region
      %s53 = ssub.s32 8192, 8192
      %54 = vsyncadd [#allocation9], %s53
      %s55 = sshll.u32 [#allocation8], 4
      %s56 = int_to_ptr.vmem [resolvable:$true] %s55
      %61 = dma.hbm_to_vmem [thread:$0]  %s3, 8192, %s56, [#allocation9], 64, 64, 4
    $region17: #{tpu_custom_call.1} parent=1 // pred_fallthru
      _
    // Predicated region
    $region18: #{tpu_custom_call.1} parent=1 // pred_check
      _
    $region19: #{tpu_custom_call.1} parent=1 // pred_check_branch
      %63 = sbr.rel (0) target = $region21
    $region20: #{tpu_custom_call.1} parent=1 // pred_region
      _
    $region21: #{tpu_custom_call.1} parent=1 // pred_fallthru
      _
    // Predicated region
    $region22: #{tpu_custom_call.1} parent=1 // pred_check
      _
    $region23: #{tpu_custom_call.1} parent=1 // pred_check_branch
      %65 = sbr.rel (0) target = $region25
    $region24: #{tpu_custom_call.1} parent=1 // pred_region
      %66 = dma.done [#allocation3], 768
    $region25: #{tpu_custom_call.1} parent=1 // pred_fallthru
      _
    // Predicated region
    $region26: #{tpu_custom_call.1} parent=1 // pred_check
      _
    $region27: #{tpu_custom_call.1} parent=1 // pred_check_branch
      %68 = sbr.rel (0) target = $region29
    $region28: #{tpu_custom_call.1} parent=1 // pred_region
      %69 = dma.done [#allocation6], 1024
    $region29: #{tpu_custom_call.1} parent=1 // pred_fallthru
      _
    // Predicated region
    $region30: #{tpu_custom_call.1} parent=1 // pred_check
      _
    $region31: #{tpu_custom_call.1} parent=1 // pred_check_branch
      %71 = sbr.rel (0) target = $region33
    $region32: #{tpu_custom_call.1} parent=1 // pred_region
      %72 = dma.done [#allocation6], 6144
    $region33: #{tpu_custom_call.1} parent=1 // pred_fallthru
      _
    // Predicated region
    $region34: #{tpu_custom_call.1} parent=1 // pred_check
      _
    $region35: #{tpu_custom_call.1} parent=1 // pred_check_branch
      %74 = sbr.rel (0) target = $region37
    $region36: #{tpu_custom_call.1} parent=1 // pred_region
      %75 = dma.done [#allocation9], 8192
    $region37: #{tpu_custom_call.1} parent=1 // pred_fallthru
      _
    %v77 = vld [vmem:[#allocation2] sm:$0xff]
    %v78 = vld [vmem:[#allocation2 + $0x8] sm:$0xff]
    %v79 = vld [vmem:[#allocation2 + $0x10] sm:$0xff]
    %v80 = vld [vmem:[#allocation2 + $0x18] sm:$0xff]
    %v81 = vld [vmem:[#allocation2 + $0x20] sm:$0xff]
    %v82 = vld [vmem:[#allocation2 + $0x28] sm:$0xff]
    %v83 = vld [vmem:[#allocation7] sm:$0xf]
    %v84 = vld [vmem:[#allocation7 + $0x4] sm:$0xf]
    %v85 = vld [vmem:[#allocation7 + $0x8] sm:$0xf]
    %v86 = vld [vmem:[#allocation7 + $0xc] sm:$0xf]
    %v87 = vld [vmem:[#allocation7 + $0x10] sm:$0xf]
    %v88 = vld [vmem:[#allocation7 + $0x14] sm:$0xf]
    %v89 = vld [vmem:[#allocation7 + $0x18] sm:$0xf]
    %v90 = vld [vmem:[#allocation7 + $0x1c] sm:$0xf]
    %v91 = vld [vmem:[#allocation7 + $0x20] sm:$0xf]
    %v92 = vld [vmem:[#allocation7 + $0x24] sm:$0xf]
    %v93 = vld [vmem:[#allocation7 + $0x28] sm:$0xf]
    %v94 = vld [vmem:[#allocation7 + $0x2c] sm:$0xf]
    %v95 = vld [vmem:[#allocation7 + $0x30] sm:$0xf]
    %v96 = vld [vmem:[#allocation7 + $0x34] sm:$0xf]
    %v97 = vld [vmem:[#allocation7 + $0x38] sm:$0xf]
    %v98 = vld [vmem:[#allocation7 + $0x3c] sm:$0xf]
    %v99 = vld [vmem:[#allocation7 + $0x40] sm:$0xf]
    %v100 = vld [vmem:[#allocation7 + $0x44] sm:$0xf]
    %v101 = vld [vmem:[#allocation7 + $0x48] sm:$0xf]
    %v102 = vld [vmem:[#allocation7 + $0x4c] sm:$0xf]
    %v103 = vld [vmem:[#allocation7 + $0x50] sm:$0xf]
    %v104 = vld [vmem:[#allocation7 + $0x54] sm:$0xf]
    %v105 = vld [vmem:[#allocation7 + $0x58] sm:$0xf]
    %v106 = vld [vmem:[#allocation7 + $0x5c] sm:$0xf]
    %v107 = vld [vmem:[#allocation7 + $0x60] sm:$0xf]
    %v108 = vld [vmem:[#allocation7 + $0x64] sm:$0xf]
    %v109 = vld [vmem:[#allocation7 + $0x68] sm:$0xf]
    %v110 = vld [vmem:[#allocation7 + $0x6c] sm:$0xf]
    %v111 = vld [vmem:[#allocation7 + $0x70] sm:$0xf]
    %v112 = vld [vmem:[#allocation7 + $0x74] sm:$0xf]
    %v113 = vld [vmem:[#allocation7 + $0x78] sm:$0xf]
    %v114 = vld [vmem:[#allocation7 + $0x7c] sm:$0xf]
    %v115 = vld [vmem:[#allocation7 + $0x80] sm:$0xf]
    %v116 = vld [vmem:[#allocation7 + $0x84] sm:$0xf]
    %v117 = vld [vmem:[#allocation7 + $0x88] sm:$0xf]
    %v118 = vld [vmem:[#allocation7 + $0x8c] sm:$0xf]
    %v119 = vld [vmem:[#allocation7 + $0x90] sm:$0xf]
    %v120 = vld [vmem:[#allocation7 + $0x94] sm:$0xf]
    %v121 = vld [vmem:[#allocation7 + $0x98] sm:$0xf]
    %v122 = vld [vmem:[#allocation7 + $0x9c] sm:$0xf]
    %v123 = vld [vmem:[#allocation7 + $0xa0] sm:$0xf]
    %v124 = vld [vmem:[#allocation7 + $0xa4] sm:$0xf]
    %v125 = vld [vmem:[#allocation7 + $0xa8] sm:$0xf]
    %v126 = vld [vmem:[#allocation7 + $0xac] sm:$0xf]
    %v127 = vld [vmem:[#allocation7 + $0xb0] sm:$0xf]
    %v128 = vld [vmem:[#allocation7 + $0xb4] sm:$0xf]
    %v129 = vld [vmem:[#allocation7 + $0xb8] sm:$0xf]
    %v130 = vld [vmem:[#allocation7 + $0xbc] sm:$0xf]
    %v131 = vld [vmem:[#allocation7 + $0xc0] sm:$0xf]
    %v132 = vld [vmem:[#allocation7 + $0xc4] sm:$0xf]
    %v133 = vld [vmem:[#allocation7 + $0xc8] sm:$0xf]
    %v134 = vld [vmem:[#allocation7 + $0xcc] sm:$0xf]
    %v135 = vld [vmem:[#allocation7 + $0xd0] sm:$0xf]
    %v136 = vld [vmem:[#allocation7 + $0xd4] sm:$0xf]
    %v137 = vld [vmem:[#allocation7 + $0xd8] sm:$0xf]
    %v138 = vld [vmem:[#allocation7 + $0xdc] sm:$0xf]
    %v139 = vld [vmem:[#allocation7 + $0xe0] sm:$0xf]
    %v140 = vld [vmem:[#allocation7 + $0xe4] sm:$0xf]
    %v141 = vld [vmem:[#allocation7 + $0xe8] sm:$0xf]
    %v142 = vld [vmem:[#allocation7 + $0xec] sm:$0xf]
    %v143 = vld [vmem:[#allocation7 + $0xf0] sm:$0xf]
    %v144 = vld [vmem:[#allocation7 + $0xf4] sm:$0xf]
    %v145 = vld [vmem:[#allocation7 + $0xf8] sm:$0xf]
    %v146 = vld [vmem:[#allocation7 + $0xfc] sm:$0xf]
    %v147 = vld [vmem:[#allocation7 + $0x100] sm:$0xf]
    %v148 = vld [vmem:[#allocation7 + $0x104] sm:$0xf]
    %v149 = vld [vmem:[#allocation7 + $0x108] sm:$0xf]
    %v150 = vld [vmem:[#allocation7 + $0x10c] sm:$0xf]
    %v151 = vld [vmem:[#allocation7 + $0x110] sm:$0xf]
    %v152 = vld [vmem:[#allocation7 + $0x114] sm:$0xf]
    %v153 = vld [vmem:[#allocation7 + $0x118] sm:$0xf]
    %v154 = vld [vmem:[#allocation7 + $0x11c] sm:$0xf]
    %v155 = vld [vmem:[#allocation7 + $0x120] sm:$0xf]
    %v156 = vld [vmem:[#allocation7 + $0x124] sm:$0xf]
    %v157 = vld [vmem:[#allocation7 + $0x128] sm:$0xf]
    %v158 = vld [vmem:[#allocation7 + $0x12c] sm:$0xf]
    %v159 = vld [vmem:[#allocation7 + $0x130] sm:$0xf]
    %v160 = vld [vmem:[#allocation7 + $0x134] sm:$0xf]
    %v161 = vld [vmem:[#allocation7 + $0x138] sm:$0xf]
    %v162 = vld [vmem:[#allocation7 + $0x13c] sm:$0xf]
    %v163 = vld [vmem:[#allocation7 + $0x140] sm:$0xf]
    %v164 = vld [vmem:[#allocation7 + $0x144] sm:$0xf]
    %v165 = vld [vmem:[#allocation7 + $0x148] sm:$0xf]
    %v166 = vld [vmem:[#allocation7 + $0x14c] sm:$0xf]
    %v167 = vld [vmem:[#allocation7 + $0x150] sm:$0xf]
    %v168 = vld [vmem:[#allocation7 + $0x154] sm:$0xf]
    %v169 = vld [vmem:[#allocation7 + $0x158] sm:$0xf]
    %v170 = vld [vmem:[#allocation7 + $0x15c] sm:$0xf]
    %v171 = vld [vmem:[#allocation7 + $0x160] sm:$0xf]
    %v172 = vld [vmem:[#allocation7 + $0x164] sm:$0xf]
    %v173 = vld [vmem:[#allocation7 + $0x168] sm:$0xf]
    %v174 = vld [vmem:[#allocation7 + $0x16c] sm:$0xf]
    %v175 = vld [vmem:[#allocation7 + $0x170] sm:$0xf]
    %v176 = vld [vmem:[#allocation7 + $0x174] sm:$0xf]
    %v177 = vld [vmem:[#allocation7 + $0x178] sm:$0xf]
    %v178 = vld [vmem:[#allocation7 + $0x17c] sm:$0xf]
    %v179 = vld [vmem:[#allocation5] sm:$0xff]
    %v180 = vld [vmem:[#allocation5 + $0x8] sm:$0xff]
    %v181 = vld [vmem:[#allocation5 + $0x10] sm:$0xff]
    %v182 = vld [vmem:[#allocation5 + $0x18] sm:$0xff]
    %v183 = vld [vmem:[#allocation5 + $0x20] sm:$0xff]
    %v184 = vld [vmem:[#allocation5 + $0x28] sm:$0xff]
    %v185 = vld [vmem:[#allocation5 + $0x30] sm:$0xff]
    %v186 = vld [vmem:[#allocation5 + $0x38] sm:$0xff]
    %v187 = vld [vmem:[#allocation8] sm:$0xf]
    %v188 = vld [vmem:[#allocation8 + $0x4] sm:$0xf]
    %v189 = vld [vmem:[#allocation8 + $0x8] sm:$0xf]
    %v190 = vld [vmem:[#allocation8 + $0xc] sm:$0xf]
    %v191 = vld [vmem:[#allocation8 + $0x10] sm:$0xf]
    %v192 = vld [vmem:[#allocation8 + $0x14] sm:$0xf]
    %v193 = vld [vmem:[#allocation8 + $0x18] sm:$0xf]
    %v194 = vld [vmem:[#allocation8 + $0x1c] sm:$0xf]
    %v195 = vld [vmem:[#allocation8 + $0x20] sm:$0xf]
    %v196 = vld [vmem:[#allocation8 + $0x24] sm:$0xf]
    %v197 = vld [vmem:[#allocation8 + $0x28] sm:$0xf]
    %v198 = vld [vmem:[#allocation8 + $0x2c] sm:$0xf]
    %v199 = vld [vmem:[#allocation8 + $0x30] sm:$0xf]
    %v200 = vld [vmem:[#allocation8 + $0x34] sm:$0xf]
    %v201 = vld [vmem:[#allocation8 + $0x38] sm:$0xf]
    %v202 = vld [vmem:[#allocation8 + $0x3c] sm:$0xf]
    %v203 = vld [vmem:[#allocation8 + $0x40] sm:$0xf]
    %v204 = vld [vmem:[#allocation8 + $0x44] sm:$0xf]
    %v205 = vld [vmem:[#allocation8 + $0x48] sm:$0xf]
    %v206 = vld [vmem:[#allocation8 + $0x4c] sm:$0xf]
    %v207 = vld [vmem:[#allocation8 + $0x50] sm:$0xf]
    %v208 = vld [vmem:[#allocation8 + $0x54] sm:$0xf]
    %v209 = vld [vmem:[#allocation8 + $0x58] sm:$0xf]
    %v210 = vld [vmem:[#allocation8 + $0x5c] sm:$0xf]
    %v211 = vld [vmem:[#allocation8 + $0x60] sm:$0xf]
    %v212 = vld [vmem:[#allocation8 + $0x64] sm:$0xf]
    %v213 = vld [vmem:[#allocation8 + $0x68] sm:$0xf]
    %v214 = vld [vmem:[#allocation8 + $0x6c] sm:$0xf]
    %v215 = vld [vmem:[#allocation8 + $0x70] sm:$0xf]
    %v216 = vld [vmem:[#allocation8 + $0x74] sm:$0xf]
    %v217 = vld [vmem:[#allocation8 + $0x78] sm:$0xf]
    %v218 = vld [vmem:[#allocation8 + $0x7c] sm:$0xf]
    %v219 = vld [vmem:[#allocation8 + $0x80] sm:$0xf]
    %v220 = vld [vmem:[#allocation8 + $0x84] sm:$0xf]
    %v221 = vld [vmem:[#allocation8 + $0x88] sm:$0xf]
    %v222 = vld [vmem:[#allocation8 + $0x8c] sm:$0xf]
    %v223 = vld [vmem:[#allocation8 + $0x90] sm:$0xf]
    %v224 = vld [vmem:[#allocation8 + $0x94] sm:$0xf]
    %v225 = vld [vmem:[#allocation8 + $0x98] sm:$0xf]
    %v226 = vld [vmem:[#allocation8 + $0x9c] sm:$0xf]
    %v227 = vld [vmem:[#allocation8 + $0xa0] sm:$0xf]
    %v228 = vld [vmem:[#allocation8 + $0xa4] sm:$0xf]
    %v229 = vld [vmem:[#allocation8 + $0xa8] sm:$0xf]
    %v230 = vld [vmem:[#allocation8 + $0xac] sm:$0xf]
    %v231 = vld [vmem:[#allocation8 + $0xb0] sm:$0xf]
    %v232 = vld [vmem:[#allocation8 + $0xb4] sm:$0xf]
    %v233 = vld [vmem:[#allocation8 + $0xb8] sm:$0xf]
    %v234 = vld [vmem:[#allocation8 + $0xbc] sm:$0xf]
    %v235 = vld [vmem:[#allocation8 + $0xc0] sm:$0xf]
    %v236 = vld [vmem:[#allocation8 + $0xc4] sm:$0xf]
    %v237 = vld [vmem:[#allocation8 + $0xc8] sm:$0xf]
    %v238 = vld [vmem:[#allocation8 + $0xcc] sm:$0xf]
    %v239 = vld [vmem:[#allocation8 + $0xd0] sm:$0xf]
    %v240 = vld [vmem:[#allocation8 + $0xd4] sm:$0xf]
    %v241 = vld [vmem:[#allocation8 + $0xd8] sm:$0xf]
    %v242 = vld [vmem:[#allocation8 + $0xdc] sm:$0xf]
    %v243 = vld [vmem:[#allocation8 + $0xe0] sm:$0xf]
    %v244 = vld [vmem:[#allocation8 + $0xe4] sm:$0xf]
    %v245 = vld [vmem:[#allocation8 + $0xe8] sm:$0xf]
    %v246 = vld [vmem:[#allocation8 + $0xec] sm:$0xf]
    %v247 = vld [vmem:[#allocation8 + $0xf0] sm:$0xf]
    %v248 = vld [vmem:[#allocation8 + $0xf4] sm:$0xf]
    %v249 = vld [vmem:[#allocation8 + $0xf8] sm:$0xf]
    %v250 = vld [vmem:[#allocation8 + $0xfc] sm:$0xf]
    %v251 = vld [vmem:[#allocation8 + $0x100] sm:$0xf]
    %v252 = vld [vmem:[#allocation8 + $0x104] sm:$0xf]
    %v253 = vld [vmem:[#allocation8 + $0x108] sm:$0xf]
    %v254 = vld [vmem:[#allocation8 + $0x10c] sm:$0xf]
    %v255 = vld [vmem:[#allocation8 + $0x110] sm:$0xf]
    %v256 = vld [vmem:[#allocation8 + $0x114] sm:$0xf]
    %v257 = vld [vmem:[#allocation8 + $0x118] sm:$0xf]
    %v258 = vld [vmem:[#allocation8 + $0x11c] sm:$0xf]
    %v259 = vld [vmem:[#allocation8 + $0x120] sm:$0xf]
    %v260 = vld [vmem:[#allocation8 + $0x124] sm:$0xf]
    %v261 = vld [vmem:[#allocation8 + $0x128] sm:$0xf]
    %v262 = vld [vmem:[#allocation8 + $0x12c] sm:$0xf]
    %v263 = vld [vmem:[#allocation8 + $0x130] sm:$0xf]
    %v264 = vld [vmem:[#allocation8 + $0x134] sm:$0xf]
    %v265 = vld [vmem:[#allocation8 + $0x138] sm:$0xf]
    %v266 = vld [vmem:[#allocation8 + $0x13c] sm:$0xf]
    %v267 = vld [vmem:[#allocation8 + $0x140] sm:$0xf]
    %v268 = vld [vmem:[#allocation8 + $0x144] sm:$0xf]
    %v269 = vld [vmem:[#allocation8 + $0x148] sm:$0xf]
    %v270 = vld [vmem:[#allocation8 + $0x14c] sm:$0xf]
    %v271 = vld [vmem:[#allocation8 + $0x150] sm:$0xf]
    %v272 = vld [vmem:[#allocation8 + $0x154] sm:$0xf]
    %v273 = vld [vmem:[#allocation8 + $0x158] sm:$0xf]
    %v274 = vld [vmem:[#allocation8 + $0x15c] sm:$0xf]
    %v275 = vld [vmem:[#allocation8 + $0x160] sm:$0xf]
    %v276 = vld [vmem:[#allocation8 + $0x164] sm:$0xf]
    %v277 = vld [vmem:[#allocation8 + $0x168] sm:$0xf]
    %v278 = vld [vmem:[#allocation8 + $0x16c] sm:$0xf]
    %v279 = vld [vmem:[#allocation8 + $0x170] sm:$0xf]
    %v280 = vld [vmem:[#allocation8 + $0x174] sm:$0xf]
    %v281 = vld [vmem:[#allocation8 + $0x178] sm:$0xf]
    %v282 = vld [vmem:[#allocation8 + $0x17c] sm:$0xf]
    %v283 = vld [vmem:[#allocation8 + $0x180] sm:$0xf]
    %v284 = vld [vmem:[#allocation8 + $0x184] sm:$0xf]
    %v285 = vld [vmem:[#allocation8 + $0x188] sm:$0xf]
    %v286 = vld [vmem:[#allocation8 + $0x18c] sm:$0xf]
    %v287 = vld [vmem:[#allocation8 + $0x190] sm:$0xf]
    %v288 = vld [vmem:[#allocation8 + $0x194] sm:$0xf]
    %v289 = vld [vmem:[#allocation8 + $0x198] sm:$0xf]
    %v290 = vld [vmem:[#allocation8 + $0x19c] sm:$0xf]
    %v291 = vld [vmem:[#allocation8 + $0x1a0] sm:$0xf]
    %v292 = vld [vmem:[#allocation8 + $0x1a4] sm:$0xf]
    %v293 = vld [vmem:[#allocation8 + $0x1a8] sm:$0xf]
    %v294 = vld [vmem:[#allocation8 + $0x1ac] sm:$0xf]
    %v295 = vld [vmem:[#allocation8 + $0x1b0] sm:$0xf]
    %v296 = vld [vmem:[#allocation8 + $0x1b4] sm:$0xf]
    %v297 = vld [vmem:[#allocation8 + $0x1b8] sm:$0xf]
    %v298 = vld [vmem:[#allocation8 + $0x1bc] sm:$0xf]
    %v299 = vld [vmem:[#allocation8 + $0x1c0] sm:$0xf]
    %v300 = vld [vmem:[#allocation8 + $0x1c4] sm:$0xf]
    %v301 = vld [vmem:[#allocation8 + $0x1c8] sm:$0xf]
    %v302 = vld [vmem:[#allocation8 + $0x1cc] sm:$0xf]
    %v303 = vld [vmem:[#allocation8 + $0x1d0] sm:$0xf]
    %v304 = vld [vmem:[#allocation8 + $0x1d4] sm:$0xf]
    %v305 = vld [vmem:[#allocation8 + $0x1d8] sm:$0xf]
    %v306 = vld [vmem:[#allocation8 + $0x1dc] sm:$0xf]
    %v307 = vld [vmem:[#allocation8 + $0x1e0] sm:$0xf]
    %v308 = vld [vmem:[#allocation8 + $0x1e4] sm:$0xf]
    %v309 = vld [vmem:[#allocation8 + $0x1e8] sm:$0xf]
    %v310 = vld [vmem:[#allocation8 + $0x1ec] sm:$0xf]
    %v311 = vld [vmem:[#allocation8 + $0x1f0] sm:$0xf]
    %v312 = vld [vmem:[#allocation8 + $0x1f4] sm:$0xf]
    %v313 = vld [vmem:[#allocation8 + $0x1f8] sm:$0xf]
    %v314 = vld [vmem:[#allocation8 + $0x1fc] sm:$0xf]
    %v323 = vunpack.c.l.b16 %v179
    %v324 = vunpack.c.h.b16 %v179
    %v325 = vunpack.c.l.b16 %v180
    %v326 = vunpack.c.h.b16 %v180
    %v327 = vunpack.c.l.b16 %v181
    %v328 = vunpack.c.h.b16 %v181
    %v329 = vunpack.c.l.b16 %v182
    %v330 = vunpack.c.h.b16 %v182
    %v331 = vunpack.c.l.b16 %v183
    %v332 = vunpack.c.h.b16 %v183
    %v333 = vunpack.c.l.b16 %v184
    %v334 = vunpack.c.h.b16 %v184
    %v335 = vunpack.c.l.b16 %v185
    %v336 = vunpack.c.h.b16 %v185
    %v337 = vunpack.c.l.b16 %v186
    %v338 = vunpack.c.h.b16 %v186
    %v339 = vpack.c.b16 %v331, %v323
    %v340 = vpack.c.b16 %v332, %v324
    %v341 = vpack.c.b16 %v333, %v325
    %v342 = vpack.c.b16 %v334, %v326
    %v343 = vpack.c.b16 %v335, %v327
    %v344 = vpack.c.b16 %v336, %v328
    %v345 = vpack.c.b16 %v337, %v329
    %v346 = vpack.c.b16 %v338, %v330
    %v483 = vunpack.c.l.b16 %v187
    %v484 = vunpack.c.l.b16 %v188
    %v485 = vunpack.c.l.b16 %v189
    %v486 = vunpack.c.l.b16 %v190
    %v487 = vunpack.c.l.b16 %v191
    %v488 = vunpack.c.l.b16 %v192
    %v489 = vunpack.c.l.b16 %v193
    %v490 = vunpack.c.l.b16 %v194
    %v491 = vunpack.c.l.b16 %v195
    %v492 = vunpack.c.l.b16 %v196
    %v493 = vunpack.c.l.b16 %v197
    %v494 = vunpack.c.l.b16 %v198
    %v495 = vunpack.c.l.b16 %v199
    %v496 = vunpack.c.l.b16 %v200
    %v497 = vunpack.c.l.b16 %v201
    %v498 = vunpack.c.l.b16 %v202
    %v499 = vunpack.c.l.b16 %v203
    %v500 = vunpack.c.l.b16 %v204
    %v501 = vunpack.c.l.b16 %v205
    %v502 = vunpack.c.l.b16 %v206
    %v503 = vunpack.c.l.b16 %v207
    %v504 = vunpack.c.l.b16 %v208
    %v505 = vunpack.c.l.b16 %v209
    %v506 = vunpack.c.l.b16 %v210
    %v507 = vunpack.c.l.b16 %v211
    %v508 = vunpack.c.l.b16 %v212
    %v509 = vunpack.c.l.b16 %v213
    %v510 = vunpack.c.l.b16 %v214
    %v511 = vunpack.c.l.b16 %v215
    %v512 = vunpack.c.l.b16 %v216
    %v513 = vunpack.c.l.b16 %v217
    %v514 = vunpack.c.l.b16 %v218
    %v515 = vunpack.c.l.b16 %v219
    %v516 = vunpack.c.l.b16 %v220
    %v517 = vunpack.c.l.b16 %v221
    %v518 = vunpack.c.l.b16 %v222
    %v519 = vunpack.c.l.b16 %v223
    %v520 = vunpack.c.l.b16 %v224
    %v521 = vunpack.c.l.b16 %v225
    %v522 = vunpack.c.l.b16 %v226
    %v523 = vunpack.c.l.b16 %v227
    %v524 = vunpack.c.l.b16 %v228
    %v525 = vunpack.c.l.b16 %v229
    %v526 = vunpack.c.l.b16 %v230
    %v527 = vunpack.c.l.b16 %v231
    %v528 = vunpack.c.l.b16 %v232
    %v529 = vunpack.c.l.b16 %v233
    %v530 = vunpack.c.l.b16 %v234
    %v531 = vunpack.c.l.b16 %v235
    %v532 = vunpack.c.l.b16 %v236
    %v533 = vunpack.c.l.b16 %v237
    %v534 = vunpack.c.l.b16 %v238
    %v535 = vunpack.c.l.b16 %v239
    %v536 = vunpack.c.l.b16 %v240
    %v537 = vunpack.c.l.b16 %v241
    %v538 = vunpack.c.l.b16 %v242
    %v539 = vunpack.c.l.b16 %v243
    %v540 = vunpack.c.l.b16 %v244
    %v541 = vunpack.c.l.b16 %v245
    %v542 = vunpack.c.l.b16 %v246
    %v543 = vunpack.c.l.b16 %v247
    %v544 = vunpack.c.l.b16 %v248
    %v545 = vunpack.c.l.b16 %v249
    %v546 = vunpack.c.l.b16 %v250
    %v547 = vunpack.c.l.b16 %v251
    %v548 = vunpack.c.l.b16 %v252
    %v549 = vunpack.c.l.b16 %v253
    %v550 = vunpack.c.l.b16 %v254
    %v551 = vunpack.c.l.b16 %v255
    %v552 = vunpack.c.l.b16 %v256
    %v553 = vunpack.c.l.b16 %v257
    %v554 = vunpack.c.l.b16 %v258
    %v555 = vunpack.c.l.b16 %v259
    %v556 = vunpack.c.l.b16 %v260
    %v557 = vunpack.c.l.b16 %v261
    %v558 = vunpack.c.l.b16 %v262
    %v559 = vunpack.c.l.b16 %v263
    %v560 = vunpack.c.l.b16 %v264
    %v561 = vunpack.c.l.b16 %v265
    %v562 = vunpack.c.l.b16 %v266
    %v563 = vunpack.c.l.b16 %v267
    %v564 = vunpack.c.l.b16 %v268
    %v565 = vunpack.c.l.b16 %v269
    %v566 = vunpack.c.l.b16 %v270
    %v567 = vunpack.c.l.b16 %v271
    %v568 = vunpack.c.l.b16 %v272
    %v569 = vunpack.c.l.b16 %v273
    %v570 = vunpack.c.l.b16 %v274
    %v571 = vunpack.c.l.b16 %v275
    %v572 = vunpack.c.l.b16 %v276
    %v573 = vunpack.c.l.b16 %v277
    %v574 = vunpack.c.l.b16 %v278
    %v575 = vunpack.c.l.b16 %v279
    %v576 = vunpack.c.l.b16 %v280
    %v577 = vunpack.c.l.b16 %v281
    %v578 = vunpack.c.l.b16 %v282
    %v579 = vunpack.c.l.b16 %v283
    %v580 = vunpack.c.l.b16 %v284
    %v581 = vunpack.c.l.b16 %v285
    %v582 = vunpack.c.l.b16 %v286
    %v583 = vunpack.c.l.b16 %v287
    %v584 = vunpack.c.l.b16 %v288
    %v585 = vunpack.c.l.b16 %v289
    %v586 = vunpack.c.l.b16 %v290
    %v587 = vunpack.c.l.b16 %v291
    %v588 = vunpack.c.l.b16 %v292
    %v589 = vunpack.c.l.b16 %v293
    %v590 = vunpack.c.l.b16 %v294
    %v591 = vunpack.c.l.b16 %v295
    %v592 = vunpack.c.l.b16 %v296
    %v593 = vunpack.c.l.b16 %v297
    %v594 = vunpack.c.l.b16 %v298
    %v595 = vunpack.c.l.b16 %v299
    %v596 = vunpack.c.l.b16 %v300
    %v597 = vunpack.c.l.b16 %v301
    %v598 = vunpack.c.l.b16 %v302
    %v599 = vunpack.c.l.b16 %v303
    %v600 = vunpack.c.l.b16 %v304
    %v601 = vunpack.c.l.b16 %v305
    %v602 = vunpack.c.l.b16 %v306
    %v603 = vunpack.c.l.b16 %v307
    %v604 = vunpack.c.l.b16 %v308
    %v605 = vunpack.c.l.b16 %v309
    %v606 = vunpack.c.l.b16 %v310
    %v607 = vunpack.c.l.b16 %v311
    %v608 = vunpack.c.l.b16 %v312
    %v609 = vunpack.c.l.b16 %v313
    %v610 = vunpack.c.l.b16 %v314
    %v611 = vpack.c.b16 %v484, %v483
    %v612 = vpack.c.b16 %v486, %v485
    %v613 = vpack.c.b16 %v488, %v487
    %v614 = vpack.c.b16 %v490, %v489
    %v615 = vpack.c.b16 %v492, %v491
    %v616 = vpack.c.b16 %v494, %v493
    %v617 = vpack.c.b16 %v496, %v495
    %v618 = vpack.c.b16 %v498, %v497
    %v619 = vpack.c.b16 %v500, %v499
    %v620 = vpack.c.b16 %v502, %v501
    %v621 = vpack.c.b16 %v504, %v503
    %v622 = vpack.c.b16 %v506, %v505
    %v623 = vpack.c.b16 %v508, %v507
    %v624 = vpack.c.b16 %v510, %v509
    %v625 = vpack.c.b16 %v512, %v511
    %v626 = vpack.c.b16 %v514, %v513
    %v627 = vpack.c.b16 %v516, %v515
    %v628 = vpack.c.b16 %v518, %v517
    %v629 = vpack.c.b16 %v520, %v519
    %v630 = vpack.c.b16 %v522, %v521
    %v631 = vpack.c.b16 %v524, %v523
    %v632 = vpack.c.b16 %v526, %v525
    %v633 = vpack.c.b16 %v528, %v527
    %v634 = vpack.c.b16 %v530, %v529
    %v635 = vpack.c.b16 %v532, %v531
    %v636 = vpack.c.b16 %v534, %v533
    %v637 = vpack.c.b16 %v536, %v535
    %v638 = vpack.c.b16 %v538, %v537
    %v639 = vpack.c.b16 %v540, %v539
    %v640 = vpack.c.b16 %v542, %v541
    %v641 = vpack.c.b16 %v544, %v543
    %v642 = vpack.c.b16 %v546, %v545
    %v643 = vpack.c.b16 %v548, %v547
    %v644 = vpack.c.b16 %v550, %v549
    %v645 = vpack.c.b16 %v552, %v551
    %v646 = vpack.c.b16 %v554, %v553
    %v647 = vpack.c.b16 %v556, %v555
    %v648 = vpack.c.b16 %v558, %v557
    %v649 = vpack.c.b16 %v560, %v559
    %v650 = vpack.c.b16 %v562, %v561
    %v651 = vpack.c.b16 %v564, %v563
    %v652 = vpack.c.b16 %v566, %v565
    %v653 = vpack.c.b16 %v568, %v567
    %v654 = vpack.c.b16 %v570, %v569
    %v655 = vpack.c.b16 %v572, %v571
    %v656 = vpack.c.b16 %v574, %v573
    %v657 = vpack.c.b16 %v576, %v575
    %v658 = vpack.c.b16 %v578, %v577
    %v659 = vpack.c.b16 %v580, %v579
    %v660 = vpack.c.b16 %v582, %v581
    %v661 = vpack.c.b16 %v584, %v583
    %v662 = vpack.c.b16 %v586, %v585
    %v663 = vpack.c.b16 %v588, %v587
    %v664 = vpack.c.b16 %v590, %v589
    %v665 = vpack.c.b16 %v592, %v591
    %v666 = vpack.c.b16 %v594, %v593
    %v667 = vpack.c.b16 %v596, %v595
    %v668 = vpack.c.b16 %v598, %v597
    %v669 = vpack.c.b16 %v600, %v599
    %v670 = vpack.c.b16 %v602, %v601
    %v671 = vpack.c.b16 %v604, %v603
    %v672 = vpack.c.b16 %v606, %v605
    %v673 = vpack.c.b16 %v608, %v607
    %v674 = vpack.c.b16 %v610, %v609
    %739 = vmatprep.subr.bf16.mxu0 0
    %740 = vmatpush1.bf16.msra.mxu0 %v611
    %741 = vmatprep.subr.bf16.mxu0 0
    %742 = vmatpush1.bf16.msra.mxu0 %v612
    %743 = vmatprep.subr.bf16.mxu0 0
    %744 = vmatpush1.bf16.msra.mxu0 %v613
    %745 = vmatprep.subr.bf16.mxu0 0
    %746 = vmatpush1.bf16.msra.mxu0 %v614
    %747 = vmatprep.subr.bf16.mxu0 0
    %748 = vmatpush1.bf16.msra.mxu0 %v615
    %749 = vmatprep.subr.bf16.mxu0 0
    %750 = vmatpush1.bf16.msra.mxu0 %v616
    %751 = vmatprep.subr.bf16.mxu0 0
    %752 = vmatpush1.bf16.msra.mxu0 %v617
    %753 = vmatprep.subr.bf16.mxu0 0
    %754 = vmatpush1.bf16.msra.mxu0 %v618
    %755 = vmatprep.subr.bf16.mxu0 0
    %756 = vmatpush1.bf16.msra.mxu0 %v619
    %757 = vmatprep.subr.bf16.mxu0 0
    %758 = vmatpush1.bf16.msra.mxu0 %v620
    %759 = vmatprep.subr.bf16.mxu0 0
    %760 = vmatpush1.bf16.msra.mxu0 %v621
    %761 = vmatprep.subr.bf16.mxu0 0
    %762 = vmatpush1.bf16.msra.mxu0 %v622
    %763 = vmatprep.subr.bf16.mxu0 0
    %764 = vmatpush1.bf16.msra.mxu0 %v623
    %765 = vmatprep.subr.bf16.mxu0 0
    %766 = vmatpush1.bf16.msra.mxu0 %v624
    %767 = vmatprep.subr.bf16.mxu0 0
    %768 = vmatpush1.bf16.msra.mxu0 %v625
    %769 = vmatprep.subr.bf16.mxu0 0
    %770 = vmatpush1.bf16.msra.mxu0 %v626
    %771 = vmatprep.mubr.bf16.mxu0 %v340
    %772 = vmatmul.mubr.bf16.gmra.mrb[0].mxu0 %v339
    %v773 = vpop.f32.mrb[0].mxu0
    %v774 = vadd.f32 0.0, %v773
    %v775 = vpop.f32.mrb[0].mxu0
    %v776 = vpop.f32.mrb[0].mxu0
    %v777 = vadd.f32 0.0, %v776
    %v778 = vpop.f32.mrb[0].mxu0
    %779 = vdwg.mxu0
    %780 = vmatprep.subr.bf16.mxu0 0
    %781 = vmatpush1.bf16.msra.mxu0 %v627
    %782 = vmatprep.subr.bf16.mxu0 0
    %783 = vmatpush1.bf16.msra.mxu0 %v628
    %784 = vmatprep.subr.bf16.mxu0 0
    %785 = vmatpush1.bf16.msra.mxu0 %v629
    %786 = vmatprep.subr.bf16.mxu0 0
    %787 = vmatpush1.bf16.msra.mxu0 %v630
    %788 = vmatprep.subr.bf16.mxu0 0
    %789 = vmatpush1.bf16.msra.mxu0 %v631
    %790 = vmatprep.subr.bf16.mxu0 0
    %791 = vmatpush1.bf16.msra.mxu0 %v632
    %792 = vmatprep.subr.bf16.mxu0 0
    %793 = vmatpush1.bf16.msra.mxu0 %v633
    %794 = vmatprep.subr.bf16.mxu0 0
    %795 = vmatpush1.bf16.msra.mxu0 %v634
    %796 = vmatprep.subr.bf16.mxu0 0
    %797 = vmatpush1.bf16.msra.mxu0 %v635
    %798 = vmatprep.subr.bf16.mxu0 0
    %799 = vmatpush1.bf16.msra.mxu0 %v636
    %800 = vmatprep.subr.bf16.mxu0 0
    %801 = vmatpush1.bf16.msra.mxu0 %v637
    %802 = vmatprep.subr.bf16.mxu0 0
    %803 = vmatpush1.bf16.msra.mxu0 %v638
    %804 = vmatprep.subr.bf16.mxu0 0
    %805 = vmatpush1.bf16.msra.mxu0 %v639
    %806 = vmatprep.subr.bf16.mxu0 0
    %807 = vmatpush1.bf16.msra.mxu0 %v640
    %808 = vmatprep.subr.bf16.mxu0 0
    %809 = vmatpush1.bf16.msra.mxu0 %v641
    %810 = vmatprep.subr.bf16.mxu0 0
    %811 = vmatpush1.bf16.msra.mxu0 %v642
    %812 = vmatprep.mubr.bf16.mxu0 %v342
    %813 = vmatmul.mubr.bf16.gmra.mrb[0].mxu0 %v341
    %v814 = vpop.f32.mrb[0].mxu0
    %v815 = vadd.f32 %v774, %v814
    %v816 = vpop.f32.mrb[0].mxu0
    %v817 = vpop.f32.mrb[0].mxu0
    %v818 = vadd.f32 %v777, %v817
    %v819 = vpop.f32.mrb[0].mxu0
    %820 = vdwg.mxu0
    %821 = vmatprep.subr.bf16.mxu0 0
    %822 = vmatpush1.bf16.msra.mxu0 %v643
    %823 = vmatprep.subr.bf16.mxu0 0
    %824 = vmatpush1.bf16.msra.mxu0 %v644
    %825 = vmatprep.subr.bf16.mxu0 0
    %826 = vmatpush1.bf16.msra.mxu0 %v645
    %827 = vmatprep.subr.bf16.mxu0 0
    %828 = vmatpush1.bf16.msra.mxu0 %v646
    %829 = vmatprep.subr.bf16.mxu0 0
    %830 = vmatpush1.bf16.msra.mxu0 %v647
    %831 = vmatprep.subr.bf16.mxu0 0
    %832 = vmatpush1.bf16.msra.mxu0 %v648
    %833 = vmatprep.subr.bf16.mxu0 0
    %834 = vmatpush1.bf16.msra.mxu0 %v649
    %835 = vmatprep.subr.bf16.mxu0 0
    %836 = vmatpush1.bf16.msra.mxu0 %v650
    %837 = vmatprep.subr.bf16.mxu0 0
    %838 = vmatpush1.bf16.msra.mxu0 %v651
    %839 = vmatprep.subr.bf16.mxu0 0
    %840 = vmatpush1.bf16.msra.mxu0 %v652
    %841 = vmatprep.subr.bf16.mxu0 0
    %842 = vmatpush1.bf16.msra.mxu0 %v653
    %843 = vmatprep.subr.bf16.mxu0 0
    %844 = vmatpush1.bf16.msra.mxu0 %v654
    %845 = vmatprep.subr.bf16.mxu0 0
    %846 = vmatpush1.bf16.msra.mxu0 %v655
    %847 = vmatprep.subr.bf16.mxu0 0
    %848 = vmatpush1.bf16.msra.mxu0 %v656
    %849 = vmatprep.subr.bf16.mxu0 0
    %850 = vmatpush1.bf16.msra.mxu0 %v657
    %851 = vmatprep.subr.bf16.mxu0 0
    %852 = vmatpush1.bf16.msra.mxu0 %v658
    %853 = vmatprep.mubr.bf16.mxu0 %v344
    %854 = vmatmul.mubr.bf16.gmra.mrb[0].mxu0 %v343
    %v855 = vpop.f32.mrb[0].mxu0
    %v856 = vadd.f32 %v815, %v855
    %v857 = vpop.f32.mrb[0].mxu0
    %v858 = vpop.f32.mrb[0].mxu0
    %v859 = vadd.f32 %v818, %v858
    %v860 = vpop.f32.mrb[0].mxu0
    %861 = vdwg.mxu0
    %862 = vmatprep.subr.bf16.mxu0 0
    %863 = vmatpush1.bf16.msra.mxu0 %v659
    %864 = vmatprep.subr.bf16.mxu0 0
    %865 = vmatpush1.bf16.msra.mxu0 %v660
    %866 = vmatprep.subr.bf16.mxu0 0
    %867 = vmatpush1.bf16.msra.mxu0 %v661
    %868 = vmatprep.subr.bf16.mxu0 0
    %869 = vmatpush1.bf16.msra.mxu0 %v662
    %870 = vmatprep.subr.bf16.mxu0 0
    %871 = vmatpush1.bf16.msra.mxu0 %v663
    %872 = vmatprep.subr.bf16.mxu0 0
    %873 = vmatpush1.bf16.msra.mxu0 %v664
    %874 = vmatprep.subr.bf16.mxu0 0
    %875 = vmatpush1.bf16.msra.mxu0 %v665
    %876 = vmatprep.subr.bf16.mxu0 0
    %877 = vmatpush1.bf16.msra.mxu0 %v666
    %878 = vmatprep.subr.bf16.mxu0 0
    %879 = vmatpush1.bf16.msra.mxu0 %v667
    %880 = vmatprep.subr.bf16.mxu0 0
    %881 = vmatpush1.bf16.msra.mxu0 %v668
    %882 = vmatprep.subr.bf16.mxu0 0
    %883 = vmatpush1.bf16.msra.mxu0 %v669
    %884 = vmatprep.subr.bf16.mxu0 0
    %885 = vmatpush1.bf16.msra.mxu0 %v670
    %886 = vmatprep.subr.bf16.mxu0 0
    %887 = vmatpush1.bf16.msra.mxu0 %v671
    %888 = vmatprep.subr.bf16.mxu0 0
    %889 = vmatpush1.bf16.msra.mxu0 %v672
    %890 = vmatprep.subr.bf16.mxu0 0
    %891 = vmatpush1.bf16.msra.mxu0 %v673
    %892 = vmatprep.subr.bf16.mxu0 0
    %893 = vmatpush1.bf16.msra.mxu0 %v674
    %894 = vmatprep.mubr.bf16.mxu0 %v346
    %895 = vmatmul.mubr.bf16.gmra.mrb[0].mxu0 %v345
    %v896 = vpop.f32.mrb[0].mxu0
    %v897 = vadd.f32 %v856, %v896
    %v898 = vpop.f32.mrb[0].mxu0
    %v899 = vpop.f32.mrb[0].mxu0
    %v900 = vadd.f32 %v859, %v899
    %v901 = vpop.f32.mrb[0].mxu0
    %902 = vdwg.mxu0
    %v909 = vunpack.c.l.b16 %v77
    %v910 = vunpack.c.h.b16 %v77
    %v911 = vunpack.c.l.b16 %v78
    %v912 = vunpack.c.h.b16 %v78
    %v913 = vunpack.c.l.b16 %v79
    %v914 = vunpack.c.h.b16 %v79
    %v915 = vunpack.c.l.b16 %v80
    %v916 = vunpack.c.h.b16 %v80
    %v917 = vunpack.c.l.b16 %v81
    %v918 = vunpack.c.h.b16 %v81
    %v919 = vunpack.c.l.b16 %v82
    %v920 = vunpack.c.h.b16 %v82
    %v921 = vpack.c.b16 %v915, %v909
    %v922 = vpack.c.b16 %v916, %v910
    %v923 = vpack.c.b16 %v917, %v911
    %v924 = vpack.c.b16 %v918, %v912
    %v925 = vpack.c.b16 %v919, %v913
    %v926 = vpack.c.b16 %v920, %v914
    %v1029 = vunpack.c.l.b16 %v83
    %v1030 = vunpack.c.l.b16 %v84
    %v1031 = vunpack.c.l.b16 %v85
    %v1032 = vunpack.c.l.b16 %v86
    %v1033 = vunpack.c.l.b16 %v87
    %v1034 = vunpack.c.l.b16 %v88
    %v1035 = vunpack.c.l.b16 %v89
    %v1036 = vunpack.c.l.b16 %v90
    %v1037 = vunpack.c.l.b16 %v91
    %v1038 = vunpack.c.l.b16 %v92
    %v1039 = vunpack.c.l.b16 %v93
    %v1040 = vunpack.c.l.b16 %v94
    %v1041 = vunpack.c.l.b16 %v95
    %v1042 = vunpack.c.l.b16 %v96
    %v1043 = vunpack.c.l.b16 %v97
    %v1044 = vunpack.c.l.b16 %v98
    %v1045 = vunpack.c.l.b16 %v99
    %v1046 = vunpack.c.l.b16 %v100
    %v1047 = vunpack.c.l.b16 %v101
    %v1048 = vunpack.c.l.b16 %v102
    %v1049 = vunpack.c.l.b16 %v103
    %v1050 = vunpack.c.l.b16 %v104
    %v1051 = vunpack.c.l.b16 %v105
    %v1052 = vunpack.c.l.b16 %v106
    %v1053 = vunpack.c.l.b16 %v107
    %v1054 = vunpack.c.l.b16 %v108
    %v1055 = vunpack.c.l.b16 %v109
    %v1056 = vunpack.c.l.b16 %v110
    %v1057 = vunpack.c.l.b16 %v111
    %v1058 = vunpack.c.l.b16 %v112
    %v1059 = vunpack.c.l.b16 %v113
    %v1060 = vunpack.c.l.b16 %v114
    %v1061 = vunpack.c.l.b16 %v115
    %v1062 = vunpack.c.l.b16 %v116
    %v1063 = vunpack.c.l.b16 %v117
    %v1064 = vunpack.c.l.b16 %v118
    %v1065 = vunpack.c.l.b16 %v119
    %v1066 = vunpack.c.l.b16 %v120
    %v1067 = vunpack.c.l.b16 %v121
    %v1068 = vunpack.c.l.b16 %v122
    %v1069 = vunpack.c.l.b16 %v123
    %v1070 = vunpack.c.l.b16 %v124
    %v1071 = vunpack.c.l.b16 %v125
    %v1072 = vunpack.c.l.b16 %v126
    %v1073 = vunpack.c.l.b16 %v127
    %v1074 = vunpack.c.l.b16 %v128
    %v1075 = vunpack.c.l.b16 %v129
    %v1076 = vunpack.c.l.b16 %v130
    %v1077 = vunpack.c.l.b16 %v131
    %v1078 = vunpack.c.l.b16 %v132
    %v1079 = vunpack.c.l.b16 %v133
    %v1080 = vunpack.c.l.b16 %v134
    %v1081 = vunpack.c.l.b16 %v135
    %v1082 = vunpack.c.l.b16 %v136
    %v1083 = vunpack.c.l.b16 %v137
    %v1084 = vunpack.c.l.b16 %v138
    %v1085 = vunpack.c.l.b16 %v139
    %v1086 = vunpack.c.l.b16 %v140
    %v1087 = vunpack.c.l.b16 %v141
    %v1088 = vunpack.c.l.b16 %v142
    %v1089 = vunpack.c.l.b16 %v143
    %v1090 = vunpack.c.l.b16 %v144
    %v1091 = vunpack.c.l.b16 %v145
    %v1092 = vunpack.c.l.b16 %v146
    %v1093 = vunpack.c.l.b16 %v147
    %v1094 = vunpack.c.l.b16 %v148
    %v1095 = vunpack.c.l.b16 %v149
    %v1096 = vunpack.c.l.b16 %v150
    %v1097 = vunpack.c.l.b16 %v151
    %v1098 = vunpack.c.l.b16 %v152
    %v1099 = vunpack.c.l.b16 %v153
    %v1100 = vunpack.c.l.b16 %v154
    %v1101 = vunpack.c.l.b16 %v155
    %v1102 = vunpack.c.l.b16 %v156
    %v1103 = vunpack.c.l.b16 %v157
    %v1104 = vunpack.c.l.b16 %v158
    %v1105 = vunpack.c.l.b16 %v159
    %v1106 = vunpack.c.l.b16 %v160
    %v1107 = vunpack.c.l.b16 %v161
    %v1108 = vunpack.c.l.b16 %v162
    %v1109 = vunpack.c.l.b16 %v163
    %v1110 = vunpack.c.l.b16 %v164
    %v1111 = vunpack.c.l.b16 %v165
    %v1112 = vunpack.c.l.b16 %v166
    %v1113 = vunpack.c.l.b16 %v167
    %v1114 = vunpack.c.l.b16 %v168
    %v1115 = vunpack.c.l.b16 %v169
    %v1116 = vunpack.c.l.b16 %v170
    %v1117 = vunpack.c.l.b16 %v171
    %v1118 = vunpack.c.l.b16 %v172
    %v1119 = vunpack.c.l.b16 %v173
    %v1120 = vunpack.c.l.b16 %v174
    %v1121 = vunpack.c.l.b16 %v175
    %v1122 = vunpack.c.l.b16 %v176
    %v1123 = vunpack.c.l.b16 %v177
    %v1124 = vunpack.c.l.b16 %v178
    %v1125 = vpack.c.b16 %v1030, %v1029
    %v1126 = vpack.c.b16 %v1032, %v1031
    %v1127 = vpack.c.b16 %v1034, %v1033
    %v1128 = vpack.c.b16 %v1036, %v1035
    %v1129 = vpack.c.b16 %v1038, %v1037
    %v1130 = vpack.c.b16 %v1040, %v1039
    %v1131 = vpack.c.b16 %v1042, %v1041
    %v1132 = vpack.c.b16 %v1044, %v1043
    %v1133 = vpack.c.b16 %v1046, %v1045
    %v1134 = vpack.c.b16 %v1048, %v1047
    %v1135 = vpack.c.b16 %v1050, %v1049
    %v1136 = vpack.c.b16 %v1052, %v1051
    %v1137 = vpack.c.b16 %v1054, %v1053
    %v1138 = vpack.c.b16 %v1056, %v1055
    %v1139 = vpack.c.b16 %v1058, %v1057
    %v1140 = vpack.c.b16 %v1060, %v1059
    %v1141 = vpack.c.b16 %v1062, %v1061
    %v1142 = vpack.c.b16 %v1064, %v1063
    %v1143 = vpack.c.b16 %v1066, %v1065
    %v1144 = vpack.c.b16 %v1068, %v1067
    %v1145 = vpack.c.b16 %v1070, %v1069
    %v1146 = vpack.c.b16 %v1072, %v1071
    %v1147 = vpack.c.b16 %v1074, %v1073
    %v1148 = vpack.c.b16 %v1076, %v1075
    %v1149 = vpack.c.b16 %v1078, %v1077
    %v1150 = vpack.c.b16 %v1080, %v1079
    %v1151 = vpack.c.b16 %v1082, %v1081
    %v1152 = vpack.c.b16 %v1084, %v1083
    %v1153 = vpack.c.b16 %v1086, %v1085
    %v1154 = vpack.c.b16 %v1088, %v1087
    %v1155 = vpack.c.b16 %v1090, %v1089
    %v1156 = vpack.c.b16 %v1092, %v1091
    %v1157 = vpack.c.b16 %v1094, %v1093
    %v1158 = vpack.c.b16 %v1096, %v1095
    %v1159 = vpack.c.b16 %v1098, %v1097
    %v1160 = vpack.c.b16 %v1100, %v1099
    %v1161 = vpack.c.b16 %v1102, %v1101
    %v1162 = vpack.c.b16 %v1104, %v1103
    %v1163 = vpack.c.b16 %v1106, %v1105
    %v1164 = vpack.c.b16 %v1108, %v1107
    %v1165 = vpack.c.b16 %v1110, %v1109
    %v1166 = vpack.c.b16 %v1112, %v1111
    %v1167 = vpack.c.b16 %v1114, %v1113
    %v1168 = vpack.c.b16 %v1116, %v1115
    %v1169 = vpack.c.b16 %v1118, %v1117
    %v1170 = vpack.c.b16 %v1120, %v1119
    %v1171 = vpack.c.b16 %v1122, %v1121
    %v1172 = vpack.c.b16 %v1124, %v1123
    %1221 = vmatprep.subr.bf16.mxu0 0
    %1222 = vmatpush1.bf16.msra.mxu0 %v1125
    %1223 = vmatprep.subr.bf16.mxu0 0
    %1224 = vmatpush1.bf16.msra.mxu0 %v1126
    %1225 = vmatprep.subr.bf16.mxu0 0
    %1226 = vmatpush1.bf16.msra.mxu0 %v1127
    %1227 = vmatprep.subr.bf16.mxu0 0
    %1228 = vmatpush1.bf16.msra.mxu0 %v1128
    %1229 = vmatprep.subr.bf16.mxu0 0
    %1230 = vmatpush1.bf16.msra.mxu0 %v1129
    %1231 = vmatprep.subr.bf16.mxu0 0
    %1232 = vmatpush1.bf16.msra.mxu0 %v1130
    %1233 = vmatprep.subr.bf16.mxu0 0
    %1234 = vmatpush1.bf16.msra.mxu0 %v1131
    %1235 = vmatprep.subr.bf16.mxu0 0
    %1236 = vmatpush1.bf16.msra.mxu0 %v1132
    %1237 = vmatprep.subr.bf16.mxu0 0
    %1238 = vmatpush1.bf16.msra.mxu0 %v1133
    %1239 = vmatprep.subr.bf16.mxu0 0
    %1240 = vmatpush1.bf16.msra.mxu0 %v1134
    %1241 = vmatprep.subr.bf16.mxu0 0
    %1242 = vmatpush1.bf16.msra.mxu0 %v1135
    %1243 = vmatprep.subr.bf16.mxu0 0
    %1244 = vmatpush1.bf16.msra.mxu0 %v1136
    %1245 = vmatprep.subr.bf16.mxu0 0
    %1246 = vmatpush1.bf16.msra.mxu0 %v1137
    %1247 = vmatprep.subr.bf16.mxu0 0
    %1248 = vmatpush1.bf16.msra.mxu0 %v1138
    %1249 = vmatprep.subr.bf16.mxu0 0
    %1250 = vmatpush1.bf16.msra.mxu0 %v1139
    %1251 = vmatprep.subr.bf16.mxu0 0
    %1252 = vmatpush1.bf16.msra.mxu0 %v1140
    %1253 = vmatprep.mubr.bf16.mxu0 %v922
    %1254 = vmatmul.mubr.bf16.gmra.mrb[0].mxu0 %v921
    %v1255 = vpop.f32.mrb[0].mxu0
    %v1256 = vadd.f32 %v897, %v1255
    %v1257 = vpop.f32.mrb[0].mxu0
    %v1258 = vpop.f32.mrb[0].mxu0
    %v1259 = vadd.f32 %v900, %v1258
    %v1260 = vpop.f32.mrb[0].mxu0
    %1261 = vdwg.mxu0
    %1262 = vmatprep.subr.bf16.mxu0 0
    %1263 = vmatpush1.bf16.msra.mxu0 %v1141
    %1264 = vmatprep.subr.bf16.mxu0 0
    %1265 = vmatpush1.bf16.msra.mxu0 %v1142
    %1266 = vmatprep.subr.bf16.mxu0 0
    %1267 = vmatpush1.bf16.msra.mxu0 %v1143
    %1268 = vmatprep.subr.bf16.mxu0 0
    %1269 = vmatpush1.bf16.msra.mxu0 %v1144
    %1270 = vmatprep.subr.bf16.mxu0 0
    %1271 = vmatpush1.bf16.msra.mxu0 %v1145
    %1272 = vmatprep.subr.bf16.mxu0 0
    %1273 = vmatpush1.bf16.msra.mxu0 %v1146
    %1274 = vmatprep.subr.bf16.mxu0 0
    %1275 = vmatpush1.bf16.msra.mxu0 %v1147
    %1276 = vmatprep.subr.bf16.mxu0 0
    %1277 = vmatpush1.bf16.msra.mxu0 %v1148
    %1278 = vmatprep.subr.bf16.mxu0 0
    %1279 = vmatpush1.bf16.msra.mxu0 %v1149
    %1280 = vmatprep.subr.bf16.mxu0 0
    %1281 = vmatpush1.bf16.msra.mxu0 %v1150
    %1282 = vmatprep.subr.bf16.mxu0 0
    %1283 = vmatpush1.bf16.msra.mxu0 %v1151
    %1284 = vmatprep.subr.bf16.mxu0 0
    %1285 = vmatpush1.bf16.msra.mxu0 %v1152
    %1286 = vmatprep.subr.bf16.mxu0 0
    %1287 = vmatpush1.bf16.msra.mxu0 %v1153
    %1288 = vmatprep.subr.bf16.mxu0 0
    %1289 = vmatpush1.bf16.msra.mxu0 %v1154
    %1290 = vmatprep.subr.bf16.mxu0 0
    %1291 = vmatpush1.bf16.msra.mxu0 %v1155
    %1292 = vmatprep.subr.bf16.mxu0 0
    %1293 = vmatpush1.bf16.msra.mxu0 %v1156
    %1294 = vmatprep.mubr.bf16.mxu0 %v924
    %1295 = vmatmul.mubr.bf16.gmra.mrb[0].mxu0 %v923
    %v1296 = vpop.f32.mrb[0].mxu0
    %v1297 = vadd.f32 %v1256, %v1296
    %v1298 = vpop.f32.mrb[0].mxu0
    %v1299 = vpop.f32.mrb[0].mxu0
    %v1300 = vadd.f32 %v1259, %v1299
    %v1301 = vpop.f32.mrb[0].mxu0
    %1302 = vdwg.mxu0
    %1303 = vmatprep.subr.bf16.mxu0 0
    %1304 = vmatpush1.bf16.msra.mxu0 %v1157
    %1305 = vmatprep.subr.bf16.mxu0 0
    %1306 = vmatpush1.bf16.msra.mxu0 %v1158
    %1307 = vmatprep.subr.bf16.mxu0 0
    %1308 = vmatpush1.bf16.msra.mxu0 %v1159
    %1309 = vmatprep.subr.bf16.mxu0 0
    %1310 = vmatpush1.bf16.msra.mxu0 %v1160
    %1311 = vmatprep.subr.bf16.mxu0 0
    %1312 = vmatpush1.bf16.msra.mxu0 %v1161
    %1313 = vmatprep.subr.bf16.mxu0 0
    %1314 = vmatpush1.bf16.msra.mxu0 %v1162
    %1315 = vmatprep.subr.bf16.mxu0 0
    %1316 = vmatpush1.bf16.msra.mxu0 %v1163
    %1317 = vmatprep.subr.bf16.mxu0 0
    %1318 = vmatpush1.bf16.msra.mxu0 %v1164
    %1319 = vmatprep.subr.bf16.mxu0 0
    %1320 = vmatpush1.bf16.msra.mxu0 %v1165
    %1321 = vmatprep.subr.bf16.mxu0 0
    %1322 = vmatpush1.bf16.msra.mxu0 %v1166
    %1323 = vmatprep.subr.bf16.mxu0 0
    %1324 = vmatpush1.bf16.msra.mxu0 %v1167
    %1325 = vmatprep.subr.bf16.mxu0 0
    %1326 = vmatpush1.bf16.msra.mxu0 %v1168
    %1327 = vmatprep.subr.bf16.mxu0 0
    %1328 = vmatpush1.bf16.msra.mxu0 %v1169
    %1329 = vmatprep.subr.bf16.mxu0 0
    %1330 = vmatpush1.bf16.msra.mxu0 %v1170
    %1331 = vmatprep.subr.bf16.mxu0 0
    %1332 = vmatpush1.bf16.msra.mxu0 %v1171
    %1333 = vmatprep.subr.bf16.mxu0 0
    %1334 = vmatpush1.bf16.msra.mxu0 %v1172
    %1335 = vmatprep.mubr.bf16.mxu0 %v926
    %1336 = vmatmul.mubr.bf16.gmra.mrb[0].mxu0 %v925
    %v1337 = vpop.f32.mrb[0].mxu0
    %v1338 = vadd.f32 %v1297, %v1337
    %v1339 = vpop.f32.mrb[0].mxu0
    %v1340 = vpop.f32.mrb[0].mxu0
    %v1341 = vadd.f32 %v1300, %v1340
    %v1342 = vpop.f32.mrb[0].mxu0
    %1343 = vdwg.mxu0
    %v1344 = vld [vmem:[%s4] sm:$0x1]
    %v1346 = vlaneseq
    %v1347 = vshrl.u32 %v1346, 7
    %v1348 = vsub.s32 0, %v1347
    %v1349 = vrot.slane %v1344, %v1348
    %v1351 = vadd.f32 %v1338, %v1349
    %v1352 = vadd.f32 %v1341, %v1349
    %v1353 = vpack.c.bf16 %v1352, %v1351
    %v1355 = vunpack.c.l.b16 %v1353
    %v1356 = vunpack.c.h.b16 %v1353
    %v1357 = vpack.c.b16 %v1355, %v1355
    %v1358 = vpack.c.b16 %v1356, %v1356
    %1361 = vst [vmem:[#allocation10] sm:$0xf] %v1357
    %1362 = vst [vmem:[#allocation10 + $0x4] sm:$0xf] %v1358
    // Predicated region
    $region38: #{tpu_custom_call.1} parent=1 // pred_check
      _
    $region39: #{tpu_custom_call.1} parent=1 // pred_check_branch
      %1364 = sbr.rel (0) target = $region41
    $region40: #{tpu_custom_call.1} parent=1 // pred_region
      %s1366 = ssub.s32 128, 128
      %1367 = vsyncadd [#allocation4], %s1366
      %s1368 = sshll.u32 [#allocation10], 4
      %s1369 = int_to_ptr.vmem [resolvable:$true] %s1368
      %1374 = dma.vmem_to_hbm [thread:$0]  %s1369, 128, %s5, [#allocation4], 64, 64, 4
    $region41: #{tpu_custom_call.1} parent=1 // pred_fallthru
      _
    // Predicated region
    $region42: #{tpu_custom_call.1} parent=1 // pred_check
      _
    $region43: #{tpu_custom_call.1} parent=1 // pred_check_branch
      %1376 = sbr.rel (0) target = $region45
    $region44: #{tpu_custom_call.1} parent=1 // pred_region
      %1377 = dma.done [#allocation4], 128
    $region45: #{tpu_custom_call.1} parent=1 // pred_fallthru
      _
    %1378 = vsyncpa [#allocation3], 1
    %1379 = vsyncpa [#allocation6], 1
    %1380 = vsyncpa [#allocation9], 1
    %1381 = vsyncpa [#allocation4], 1

</llo_original>
